<compile_context>
chip_gen: v7x
topology: tpu7x:2x2x1
jax: 0.10.0
libtpu: 0.0.40
codegen_flags: <defaults>
</compile_context>

<pallas_src>
import functools

import jax
import jax.numpy as jnp
from jax import lax
from jax.experimental import pallas as pl
from jax.experimental.pallas import tpu as pltpu

_LANE = 128          # lane width (fixed by hardware)
_MAX_ROWS_CAP = 8192 # 8192 rows * 128 lanes * 4 B = 4 MiB per f32 block
_SMALL_N = 1 << 18   # below ~2 MiB of total traffic, plain jnp.sum wins


def _round_up(x, m):
    return ((x + m - 1) // m) * m


def _partial_sums_kernel(x_ref, t_ref, p_ref, *, block_rows, last_valid_rows):
    """Per grid step: reduce a (block_rows, 128) tile of each input down to an
    (8, 128) f32 partial sum with VPU elementwise adds only, storing both
    partials into one lane-dense (1, 2, 8, 128) output block."""
    g = block_rows // 8

    def _store(xv, tv):
        p_ref[0, 0] = jnp.sum(xv.reshape(g, 8, _LANE), axis=0)
        p_ref[0, 1] = jnp.sum(tv.reshape(g, 8, _LANE), axis=0)

    if last_valid_rows == block_rows:
        # All blocks are full -> no masking anywhere.
        _store(x_ref[...].astype(jnp.float32), t_ref[...].astype(jnp.float32))
    else:
        is_last = pl.program_id(0) == pl.num_programs(0) - 1

        @pl.when(jnp.logical_not(is_last))
        def _():
            _store(x_ref[...].astype(jnp.float32),
                   t_ref[...].astype(jnp.float32))

        @pl.when(is_last)
        def _():
            # Only the ragged last block pays for iota + compare + selects;
            # rows >= last_valid_rows hold unspecified pipeline padding.
            rid = lax.broadcasted_iota(jnp.int32, (block_rows, _LANE), 0)
            keep = rid < last_valid_rows
            _store(jnp.where(keep, x_ref[...].astype(jnp.float32), 0.0),
                   jnp.where(keep, t_ref[...].astype(jnp.float32), 0.0))


def _pick_block_rows(rows, itemsize):
    """Largest block that keeps 2 inputs x 2 pipeline buffers under ~1/4 of
    this generation's VMEM, while leaving >= 2 grid steps for v7x megacore."""
    try:
        vmem_bytes = pltpu.get_tpu_info().vmem_capacity_bytes
    except Exception:  # pragma: no cover - conservative fallback (v7x per-TC)
        vmem_bytes = 64 << 20
    sub = max(8, 32 // itemsize)  # sublane alignment for packed dtypes
    budget_rows = (vmem_bytes // 4) // (2 * 2 * _LANE * itemsize)
    tm = min(_MAX_ROWS_CAP, max(sub, (budget_rows // sub) * sub))
    # Keep at least 2 grid steps so ("parallel",) can shard across both v7x TCs.
    tm = min(tm, _round_up(-(-rows // 2), sub))
    return max(tm, sub)


def _combine(s_x, s_t, smooth):
    smooth = jnp.float32(smooth)
    dice = (2.0 * (s_x * s_t) + smooth) / ((s_x + s_t) + smooth)
    # F.binary_cross_entropy(s_x, s_t, reduction='mean') on 0-d tensors,
    # with PyTorch's log clamp at -100.  Requires s_x in [0, 1], exactly as
    # the reference module does.
    log_x = jnp.maximum(jnp.log(s_x), -100.0)
    log_1mx = jnp.maximum(jnp.log(1.0 - s_x), -100.0)
    bce = -(s_t * log_x + (1.0 - s_t) * log_1mx)
    return bce + dice


def dice_bce_loss(inputs, targets, smooth=1.0, *,
                  _small_n_threshold=_SMALL_N, _max_rows=None):
    """Pallas-accelerated DiceBCELoss.forward (matches the PyTorch module)."""
    x = inputs.reshape(-1)
    t = targets.reshape(-1)
    n = x.shape[0]

    n_main = (n // _LANE) * _LANE

    # Fast path: kernel launch + pipeline warm-up dominates tiny reductions.
    if n < _small_n_threshold or n_main == 0:
        s_x = jnp.sum(x.astype(jnp.float32))
        s_t = jnp.sum(t.astype(jnp.float32))
        return _combine(s_x, s_t, smooth)

    # The lane-aligned prefix streams through the kernel (zero-copy reshape);
    # the <128-element tail is summed in plain JAX, so there is no jnp.pad
    # (no extra HBM read+write pass) for misaligned sizes.
    tail_x = jnp.float32(0.0)
    tail_t = jnp.float32(0.0)
    if n_main != n:
        tail_x = jnp.sum(x[n_main:].astype(jnp.float32))
        tail_t = jnp.sum(t[n_main:].astype(jnp.float32))

    x2 = x[:n_main].reshape(-1, _LANE)
    t2 = t[:n_main].reshape(-1, _LANE)
    rows = x2.shape[0]
    itemsize = x2.dtype.itemsize

    tm = _pick_block_rows(rows, itemsize)
    if _max_rows is not None:  # test/tuning override
        sub = max(8, 32 // itemsize)
        tm = min(tm, max(sub, _round_up(_max_rows, sub)))

    nblocks = -(-rows // tm)
    last_valid_rows = rows - (nblocks - 1) * tm

    kernel = functools.partial(
        _partial_sums_kernel, block_rows=tm, last_valid_rows=last_valid_rows
    )
    partials = pl.pallas_call(
        kernel,
        out_shape=jax.ShapeDtypeStruct((nblocks, 2, 8, _LANE), jnp.float32),
        grid=(nblocks,),
        in_specs=[
            pl.BlockSpec((tm, _LANE), lambda i: (i, 0)),
            pl.BlockSpec((tm, _LANE), lambda i: (i, 0)),
        ],
        out_specs=pl.BlockSpec((1, 2, 8, _LANE), lambda i: (i, 0, 0, 0)),
        compiler_params=pltpu.CompilerParams(
            # No cross-iteration carry -> shardable across both TCs on v7x.
            dimension_semantics=("parallel",),
            # 2 inputs x 2 buffers x <=4 MiB <= 16 MiB; 32 MiB clears v5e's
            # ~16 MiB scoped default with margin and fits v7x's 64 MiB physical.
            vmem_limit_bytes=32 << 20,
        ),
    )(x2, t2)

    # Tiny (nblocks, 2, 8, 128) combine + scalar loss math in plain JAX.
    sums = jnp.sum(partials, axis=(0, 2, 3))
    s_x = sums[0] + tail_x
    s_t = sums[1] + tail_t
    return _combine(s_x, s_t, smooth)


def _reference(inputs, targets, smooth=1.0):
    """Pure-JAX reference with the same semantics as the PyTorch module."""
    s_x = jnp.sum(inputs.astype(jnp.float32))
    s_t = jnp.sum(targets.astype(jnp.float32))
    dice = (2.0 * (s_x * s_t) + smooth) / ((s_x + s_t) + smooth)
    bce = -(s_t * jnp.maximum(jnp.log(s_x), -100.0)
            + (1.0 - s_t) * jnp.maximum(jnp.log(1.0 - s_x), -100.0))
    return bce + dice


def _check(loss, ref):
    assert jnp.allclose(loss, ref, rtol=1e-4, atol=1e-5), (loss, ref)


if __name__ == "__main__":
    key = jax.random.PRNGKey(0)
    keys = jax.random.split(key, 8)

    # 1) Module-typical small NCHW shape -> exercises the small-input fast path.
    #    Data is scaled so the global sums lie in (0, 1) (F.binary_cross_entropy
    #    requires its input in [0, 1]).
    shape = (2, 4, 16, 16)
    n = 2 * 4 * 16 * 16
    inputs = jax.random.uniform(keys[0], shape, jnp.float32) / (2.0 * n)
    targets = jax.random.uniform(keys[1], shape, jnp.float32) / (2.0 * n)
    loss = jax.block_until_ready(dice_bce_loss(inputs, targets))
    _check(loss, _reference(inputs, targets))

    # 2) Kernel path, multi-block, fully aligned (unmasked fast branch).
    shape2 = (1, 1, 1024, 128)
    n2 = 1024 * 128
    inputs2 = jax.random.uniform(keys[2], shape2, jnp.float32) / (2.0 * n2)
    targets2 = jax.random.uniform(keys[3], shape2, jnp.float32) / (2.0 * n2)
    loss2 = jax.block_until_ready(
        dice_bce_loss(inputs2, targets2, _small_n_threshold=0, _max_rows=512))
    _check(loss2, _reference(inputs2, targets2))

    # 3) Kernel path, multi-block with a ragged last block (masked via pl.when).
    shape3 = (1, 1, 1041, 128)
    n3 = 1041 * 128
    inputs3 = jax.random.uniform(keys[4], shape3, jnp.float32) / (2.0 * n3)
    targets3 = jax.random.uniform(keys[5], shape3, jnp.float32) / (2.0 * n3)
    loss3 = jax.block_until_ready(
        dice_bce_loss(inputs3, targets3, _small_n_threshold=0, _max_rows=512))
    _check(loss3, _reference(inputs3, targets3))

    # 4) Non-lane-aligned total size -> lane-aligned prefix through the kernel,
    #    <128-element tail summed in plain JAX (no jnp.pad).
    shape4 = (2, 4, 17, 19)
    n4 = 2 * 4 * 17 * 19
    inputs4 = jax.random.uniform(keys[6], shape4, jnp.float32) / (2.0 * n4)
    targets4 = jax.random.uniform(keys[7], shape4, jnp.float32) / (2.0 * n4)
    loss4 = jax.block_until_ready(
        dice_bce_loss(inputs4, targets4, _small_n_threshold=0))
    _check(loss4, _reference(inputs4, targets4))

    print("KERNEL_OK")
</pallas_src>

<mosaic_0001>
module attributes {stable_mosaic.version = 11 : i64} {
  func.func @_partial_sums_kernel(%arg0: i32, %arg1: memref<512x128xf32, #tpu.memory_space<vmem>>, %arg2: memref<512x128xf32, #tpu.memory_space<vmem>>, %arg3: memref<1x2x8x128xf32, #tpu.memory_space<vmem>>) attributes {dimension_semantics = [#tpu.dimension_semantics<parallel>], iteration_bounds = array<i64: 2>, scalar_prefetch = 0 : i64, scratch_operands = 0 : i64, tpu.core_type = #tpu.core_type<tc>, window_params = [{transform_indices = @transform_0, window_bounds = array<i64: 512, 128>}, {transform_indices = @transform_1, window_bounds = array<i64: 512, 128>}, {transform_indices = @transform_2, window_bounds = array<i64: 1, 2, 8, 128>}]} {
    %c0 = arith.constant 0 : index
    %c0_0 = arith.constant 0 : index
    %0 = vector.load %arg1[%c0, %c0_0] : memref<512x128xf32, #tpu.memory_space<vmem>>, vector<512x128xf32>
    %c0_1 = arith.constant 0 : index
    %c0_2 = arith.constant 0 : index
    %1 = vector.load %arg2[%c0_1, %c0_2] : memref<512x128xf32, #tpu.memory_space<vmem>>, vector<512x128xf32>
    %2 = vector.shape_cast %0 : vector<512x128xf32> to vector<64x8x128xf32>
    %cst = arith.constant dense<0.000000e+00> : vector<8x128xf32>
    %3 = vector.multi_reduction <add>, %2, %cst [0] : vector<64x8x128xf32> to vector<8x128xf32>
    %c0_3 = arith.constant 0 : index
    %c0_4 = arith.constant 0 : index
    %c0_5 = arith.constant 0 : index
    %c0_6 = arith.constant 0 : index
    %4 = vector.load %arg3[%c0_3, %c0_4, %c0_5, %c0_6] : memref<1x2x8x128xf32, #tpu.memory_space<vmem>>, vector<1x1x8x128xf32>
    %5 = vector.shape_cast %4 : vector<1x1x8x128xf32> to vector<8x128xf32>
    %6 = vector.shape_cast %3 : vector<8x128xf32> to vector<1x1x8x128xf32>
    tpu.vector_store %arg3[%c0_3, %c0_4, %c0_5, %c0_6], %6 {strides = array<i32>} : memref<1x2x8x128xf32, #tpu.memory_space<vmem>>, vector<1x1x8x128xf32>,
    %7 = vector.shape_cast %1 : vector<512x128xf32> to vector<64x8x128xf32>
    %cst_7 = arith.constant dense<0.000000e+00> : vector<8x128xf32>
    %8 = vector.multi_reduction <add>, %7, %cst_7 [0] : vector<64x8x128xf32> to vector<8x128xf32>
    %c0_8 = arith.constant 0 : index
    %c1 = arith.constant 1 : index
    %c0_9 = arith.constant 0 : index
    %c0_10 = arith.constant 0 : index
    %9 = vector.load %arg3[%c0_8, %c1, %c0_9, %c0_10] : memref<1x2x8x128xf32, #tpu.memory_space<vmem>>, vector<1x1x8x128xf32>
    %10 = vector.shape_cast %9 : vector<1x1x8x128xf32> to vector<8x128xf32>
    %11 = vector.shape_cast %8 : vector<8x128xf32> to vector<1x1x8x128xf32>
    tpu.vector_store %arg3[%c0_8, %c1, %c0_9, %c0_10], %11 {strides = array<i32>} : memref<1x2x8x128xf32, #tpu.memory_space<vmem>>, vector<1x1x8x128xf32>,
    return
  }
  func.func @transform_0(%arg0: i32) -> (i32, i32) {
    %c0_i32 = arith.constant 0 : i32
    %c0_i32_0 = arith.constant 0 : i32
    return %arg0, %c0_i32 : i32, i32
  }
  func.func @transform_1(%arg0: i32) -> (i32, i32) {
    %c0_i32 = arith.constant 0 : i32
    %c0_i32_0 = arith.constant 0 : i32
    return %arg0, %c0_i32 : i32, i32
  }
  func.func @transform_2(%arg0: i32) -> (i32, i32, i32, i32) {
    %c0_i32 = arith.constant 0 : i32
    %c0_i32_0 = arith.constant 0 : i32
    %c0_i32_1 = arith.constant 0 : i32
    %c0_i32_2 = arith.constant 0 : i32
    return %arg0, %c0_i32, %c0_i32_0, %c0_i32_1 : i32, i32, i32, i32
  }
}

</mosaic_0001>

<llo_original>
// kernel: tpu_custom_call.1
$region0: #{tpu_custom_call.1}
  #allocation0 [shape = 'u32[]', space=smem, size = 0x4, offset = 0x4, fixed_abs, tag = 'smem constant byte address 0x4 - core index']
  #allocation1 [shape = 'u32[144,128]{1,0:T(1,128)}', space=vmem, size = 0x12000, scoped, tag = 'internal scratch']
  %s0 = inlined_call_operand.hbm [shape: f32[1024,128], index: 0, kind: input, shape index: {}]
  %s1 = inlined_call_operand.hbm [shape: f32[1024,128], index: 1, kind: input, shape index: {}]
  %s2 = inlined_call_operand.hbm [shape: f32[2,2,8,128], index: 2, kind: output, shape index: {}]
  %s3 = sld [smem:[#allocation0]]
  $region49: #{tpu_custom_call.1} parent=0
    _
  %s5 = ssub.s32 1, %s3
  %s6 = scalar_select 0, %s5, %s3
  $region1: #{tpu_custom_call.1} parent=0
    #allocation2 [shape = 'u8[524288]{0}', space=vmem, size = 0x80000, scoped, tag = 'input window, operand 0']
    #allocation3 [shape = 's32[2]{0}', space=sflag, size = 0x8, scoped, tag = 'scoped memory for tpu_custom_call.1']
    #allocation4 [shape = 's32[2]{0}', space=sflag, size = 0x8, scoped, tag = 'scoped memory for tpu_custom_call.1']
    #allocation5 [shape = 'u8[524288]{0}', space=vmem, size = 0x80000, scoped, tag = 'input window, operand 1']
    #allocation6 [shape = 's32[2]{0}', space=sflag, size = 0x8, scoped, tag = 'scoped memory for tpu_custom_call.1']
    #allocation7 [shape = 'u8[16384]{0}', space=vmem, size = 0x4000, scoped, tag = 'output window, operand 0']
    %7 = vsyncpa [#allocation3], 0
    %s8 = scalar_lea.sflag [#allocation3], 1
    %9 = vsyncpa %s8, 0
    %10 = vsyncpa [#allocation6], 0
    %s11 = scalar_lea.sflag [#allocation6], 1
    %12 = vsyncpa %s11, 0
    %13 = vsyncpa [#allocation4], 0
    %s14 = scalar_lea.sflag [#allocation4], 1
    %15 = vsyncpa %s14, 0
    loop: start=0, step=1, limit=4
    $region2: #{tpu_custom_call.1} parent=1 // loop_pre_header
      _
    $region3: #{tpu_custom_call.1} parent=1 // loop_header
      %s17 = sphi 0, %s21
      %p18 = scmp.ge.s32.totalorder %s17, 4
      %s27 = sphi 0, %s29
      %s30 = sphi 0, %s27
      %s31 = sphi 0, %s30
      %s47 = sphi 0, %s31
      %s53 = sphi 0, %s55
      %s56 = sphi 0, %s53
      %s57 = sphi 0, %s56
      %s73 = sphi 0, %s57
      %s79 = sphi 0, %s81
      %s82 = sphi 0, %s79
      %s83 = sphi 0, %s82
      %s99 = sphi 0, %s83
    $region4: #{tpu_custom_call.1} parent=1 // loop_header_branch
      %20 = sbr.rel (%p18) target = $region8
    $region5: #{tpu_custom_call.1} parent=1 // loop_body
      %s22 = ssub.s32 %s17, 1
      %s23 = ssub.s32 %s17, 2
      %s24 = sadd.s32 %s17, 1
      %s25 = ssub.s32 %s17, %s24
      %p26 = scmp.eq.s32.totalorder %s25, 0
      %s28 = sadd.s32 %s27, 1
      %s29 = scalar_select %p26, %s27, %s28
      %p32 = pneg %p26
      %p33 = scmp.eq.s32.totalorder %s17, 1
      %p34 = por %p32, %p33
      %p35 = scmp.ne.s32.totalorder %s27, %s30
      %p36 = scmp.eq.s32.totalorder %s17, 0
      %p37 = por %p35, %p36
      %p38 = scmp.ne.s32.totalorder %s27, %s30
      %p39 = scmp.eq.s32.totalorder %s22, 1
      %p40 = por %p38, %p39
      %p41 = scmp.ne.s32.totalorder %s30, %s31
      %p42 = scmp.eq.s32.totalorder %s22, 0
      %p43 = por %p41, %p42
      %p44 = scmp.ne.s32.totalorder %s30, %s31
      %p45 = scmp.eq.s32.totalorder %s23, 1
      %p46 = por %p44, %p45
      %p48 = scmp.ne.s32.totalorder %s31, %s47
      %p49 = scmp.eq.s32.totalorder %s23, 0
      %p50 = por %p48, %p49
      %s51 = ssub.s32 %s17, %s24
      %p52 = scmp.eq.s32.totalorder %s51, 0
      %s54 = sadd.s32 %s53, 1
      %s55 = scalar_select %p52, %s53, %s54
      %p58 = pneg %p52
      %p59 = scmp.eq.s32.totalorder %s17, 1
      %p60 = por %p58, %p59
      %p61 = scmp.ne.s32.totalorder %s53, %s56
      %p62 = scmp.eq.s32.totalorder %s17, 0
      %p63 = por %p61, %p62
      %p64 = scmp.ne.s32.totalorder %s53, %s56
      %p65 = scmp.eq.s32.totalorder %s22, 1
      %p66 = por %p64, %p65
      %p67 = scmp.ne.s32.totalorder %s56, %s57
      %p68 = scmp.eq.s32.totalorder %s22, 0
      %p69 = por %p67, %p68
      %p70 = scmp.ne.s32.totalorder %s56, %s57
      %p71 = scmp.eq.s32.totalorder %s23, 1
      %p72 = por %p70, %p71
      %p74 = scmp.ne.s32.totalorder %s57, %s73
      %p75 = scmp.eq.s32.totalorder %s23, 0
      %p76 = por %p74, %p75
      %s77 = ssub.s32 %s17, %s24
      %p78 = scmp.eq.s32.totalorder %s77, 0
      %s80 = sadd.s32 %s79, 1
      %s81 = scalar_select %p78, %s79, %s80
      %p84 = pneg %p78
      %p85 = scmp.eq.s32.totalorder %s17, 1
      %p86 = por %p84, %p85
      %p87 = scmp.ne.s32.totalorder %s79, %s82
      %p88 = scmp.eq.s32.totalorder %s17, 0
      %p89 = por %p87, %p88
      %p90 = scmp.ne.s32.totalorder %s79, %s82
      %p91 = scmp.eq.s32.totalorder %s22, 1
      %p92 = por %p90, %p91
      %p93 = scmp.ne.s32.totalorder %s82, %s83
      %p94 = scmp.eq.s32.totalorder %s22, 0
      %p95 = por %p93, %p94
      %p96 = scmp.ne.s32.totalorder %s82, %s83
      %p97 = scmp.eq.s32.totalorder %s23, 1
      %p98 = por %p96, %p97
      %p100 = scmp.ne.s32.totalorder %s83, %s99
      %p101 = scmp.eq.s32.totalorder %s23, 0
      %p102 = por %p100, %p101
      %p103 = scmp.le.s32.totalorder 1, %s17
      %p104 = scmp.lt.s32.totalorder %s17, 3
      %p105 = pnand %p103, %p104
      %p106 = pneg %p105
      // Predicated region
      $region9: #{tpu_custom_call.1} parent=5 // pred_check
        _
      $region10: #{tpu_custom_call.1} parent=5 // pred_check_branch
        %108 = sbr.rel (%p105) target = $region12
      $region11: #{tpu_custom_call.1} parent=5 // pred_region
        %s109 = ssub.s32 %s17, 1
      $region12: #{tpu_custom_call.1} parent=5 // pred_fallthru
        _
      %p110 = scmp.lt.s32.totalorder %s17, 2
      // Predicated region
      $region13: #{tpu_custom_call.1} parent=5 // pred_check
        %p111 = pneg %p110
      $region14: #{tpu_custom_call.1} parent=5 // pred_check_branch
        %113 = sbr.rel (%p111) target = $region16
      $region15: #{tpu_custom_call.1} parent=5 // pred_region
        // Predicated region
        $region17: #{tpu_custom_call.1} parent=15 // pred_check
          %p114 = pneg %p37
        $region18: #{tpu_custom_call.1} parent=15 // pred_check_branch
          %116 = sbr.rel (%p114) target = $region20
        $region19: #{tpu_custom_call.1} parent=15 // pred_region
          %s117 = sand.u32 %s27, 1
          %s118 = scalar_lea.sflag [#allocation3], %s117
          %s119 = sand.u32 %s27, 1
          %s120 = smul.addr %s119, 512
          %s121 = scalar_lea.vmem [#allocation2], %s120
          %s122 = smul.u32 64, %s17
          %s124 = ssub.s32 8192, 8192
          %125 = vsyncadd %s118, %s124
          %s126 = smul.addr %s122, 128
          %s127 = scalar_lea.hbm %s0, %s126
          %s128 = sshll.u32 %s121, 4
          %s129 = int_to_ptr.vmem [resolvable:$true] %s128
          %134 = dma.hbm_to_vmem [thread:$0]  %s127, 8192, %s129, %s118, 128, 128, 8
        $region20: #{tpu_custom_call.1} parent=15 // pred_fallthru
          _
        // Predicated region
        $region21: #{tpu_custom_call.1} parent=15 // pred_check
          %p135 = pneg %p63
        $region22: #{tpu_custom_call.1} parent=15 // pred_check_branch
          %137 = sbr.rel (%p135) target = $region24
        $region23: #{tpu_custom_call.1} parent=15 // pred_region
          %s138 = sand.u32 %s53, 1
          %s139 = scalar_lea.sflag [#allocation6], %s138
          %s140 = sand.u32 %s53, 1
          %s141 = smul.addr %s140, 512
          %s142 = scalar_lea.vmem [#allocation5], %s141
          %s143 = smul.u32 64, %s17
          %s145 = ssub.s32 8192, 8192
          %146 = vsyncadd %s139, %s145
          %s147 = smul.addr %s143, 128
          %s148 = scalar_lea.hbm %s1, %s147
          %s149 = sshll.u32 %s142, 4
          %s150 = int_to_ptr.vmem [resolvable:$true] %s149
          %155 = dma.hbm_to_vmem [thread:$0]  %s148, 8192, %s150, %s139, 128, 128, 8
        $region24: #{tpu_custom_call.1} parent=15 // pred_fallthru
          _
      $region16: #{tpu_custom_call.1} parent=5 // pred_fallthru
        _
      %p156 = scmp.le.s32.totalorder 1, %s17
      %p157 = scmp.lt.s32.totalorder %s17, 3
      %p158 = pnand %p156, %p157
      %p159 = pneg %p158
      // Predicated region
      $region25: #{tpu_custom_call.1} parent=5 // pred_check
        _
      $region26: #{tpu_custom_call.1} parent=5 // pred_check_branch
        %161 = sbr.rel (%p158) target = $region28
      $region27: #{tpu_custom_call.1} parent=5 // pred_region
        %s162 = ssub.s32 %s17, 1
        %s163 = sand.u32 %s30, 1
        %s164 = scalar_lea.sflag [#allocation3], %s163
        %s165 = sand.u32 %s30, 1
        %s166 = smul.addr %s165, 512
        %s167 = scalar_lea.vmem [#allocation2], %s166
        // Predicated region
        $region29: #{tpu_custom_call.1} parent=27 // pred_check
          %p168 = pneg %p43
        $region30: #{tpu_custom_call.1} parent=27 // pred_check_branch
          %170 = sbr.rel (%p168) target = $region32
        $region31: #{tpu_custom_call.1} parent=27 // pred_region
          %171 = dma.done %s164, 8192
        $region32: #{tpu_custom_call.1} parent=27 // pred_fallthru
          _
        %s172 = sand.u32 %s56, 1
        %s173 = scalar_lea.sflag [#allocation6], %s172
        %s174 = sand.u32 %s56, 1
        %s175 = smul.addr %s174, 512
        %s176 = scalar_lea.vmem [#allocation5], %s175
        // Predicated region
        $region33: #{tpu_custom_call.1} parent=27 // pred_check
          %p177 = pneg %p69
        $region34: #{tpu_custom_call.1} parent=27 // pred_check_branch
          %179 = sbr.rel (%p177) target = $region36
        $region35: #{tpu_custom_call.1} parent=27 // pred_region
          %180 = dma.done %s173, 8192
        $region36: #{tpu_custom_call.1} parent=27 // pred_fallthru
          _
        %s181 = sand.u32 %s30, 1
        %s182 = scalar_lea.sflag [#allocation3], %s181
        %s183 = sand.u32 %s30, 1
        %s184 = smul.addr %s183, 512
        %s185 = scalar_lea.vmem [#allocation2], %s184
        %p186 = pneg %p43
        %p187 = pneg %p40
        %s188 = sand.u32 %s56, 1
        %s189 = scalar_lea.sflag [#allocation6], %s188
        %s190 = sand.u32 %s56, 1
        %s191 = smul.addr %s190, 512
        %s192 = scalar_lea.vmem [#allocation5], %s191
        %p193 = pneg %p69
        %p194 = pneg %p66
        %p195 = pneg %p95
        %p196 = pneg %p92
        %s197 = sand.u32 %s82, 1
        %s198 = scalar_lea.sflag [#allocation4], %s197
        %s199 = sand.u32 %s82, 1
        %s200 = smul.addr %s199, 16
        %s201 = scalar_lea.vmem [#allocation7], %s200
        %s202 = smul.u32 64, %s22
        %s203 = smul.u32 64, %s22
        %v204 = vld [vmem:[%s167] sm:$0xff]
        %v205 = vld [vmem:[%s167 + $0x8] sm:$0xff]
        %v206 = vld [vmem:[%s167 + $0x10] sm:$0xff]
        %v207 = vld [vmem:[%s167 + $0x18] sm:$0xff]
        %v208 = vld [vmem:[%s167 + $0x20] sm:$0xff]
        %v209 = vld [vmem:[%s167 + $0x28] sm:$0xff]
        %v210 = vld [vmem:[%s167 + $0x30] sm:$0xff]
        %v211 = vld [vmem:[%s167 + $0x38] sm:$0xff]
        %v212 = vld [vmem:[%s167 + $0x40] sm:$0xff]
        %v213 = vld [vmem:[%s167 + $0x48] sm:$0xff]
        %v214 = vld [vmem:[%s167 + $0x50] sm:$0xff]
        %v215 = vld [vmem:[%s167 + $0x58] sm:$0xff]
        %v216 = vld [vmem:[%s167 + $0x60] sm:$0xff]
        %v217 = vld [vmem:[%s167 + $0x68] sm:$0xff]
        %v218 = vld [vmem:[%s167 + $0x70] sm:$0xff]
        %v219 = vld [vmem:[%s167 + $0x78] sm:$0xff]
        %v220 = vld [vmem:[%s167 + $0x80] sm:$0xff]
        %v221 = vld [vmem:[%s167 + $0x88] sm:$0xff]
        %v222 = vld [vmem:[%s167 + $0x90] sm:$0xff]
        %v223 = vld [vmem:[%s167 + $0x98] sm:$0xff]
        %v224 = vld [vmem:[%s167 + $0xa0] sm:$0xff]
        %v225 = vld [vmem:[%s167 + $0xa8] sm:$0xff]
        %v226 = vld [vmem:[%s167 + $0xb0] sm:$0xff]
        %v227 = vld [vmem:[%s167 + $0xb8] sm:$0xff]
        %v228 = vld [vmem:[%s167 + $0xc0] sm:$0xff]
        %v229 = vld [vmem:[%s167 + $0xc8] sm:$0xff]
        %v230 = vld [vmem:[%s167 + $0xd0] sm:$0xff]
        %v231 = vld [vmem:[%s167 + $0xd8] sm:$0xff]
        %v232 = vld [vmem:[%s167 + $0xe0] sm:$0xff]
        %v233 = vld [vmem:[%s167 + $0xe8] sm:$0xff]
        %v234 = vld [vmem:[%s167 + $0xf0] sm:$0xff]
        %v235 = vld [vmem:[%s167 + $0xf8] sm:$0xff]
        %v236 = vld [vmem:[%s167 + $0x100] sm:$0xff]
        %v237 = vld [vmem:[%s167 + $0x108] sm:$0xff]
        %v238 = vld [vmem:[%s167 + $0x110] sm:$0xff]
        %v239 = vld [vmem:[%s167 + $0x118] sm:$0xff]
        %v240 = vld [vmem:[%s167 + $0x120] sm:$0xff]
        %v241 = vld [vmem:[%s167 + $0x128] sm:$0xff]
        %v242 = vld [vmem:[%s167 + $0x130] sm:$0xff]
        %v243 = vld [vmem:[%s167 + $0x138] sm:$0xff]
        %v244 = vld [vmem:[%s167 + $0x140] sm:$0xff]
        %v245 = vld [vmem:[%s167 + $0x148] sm:$0xff]
        %v246 = vld [vmem:[%s167 + $0x150] sm:$0xff]
        %v247 = vld [vmem:[%s167 + $0x158] sm:$0xff]
        %v248 = vld [vmem:[%s167 + $0x160] sm:$0xff]
        %v249 = vld [vmem:[%s167 + $0x168] sm:$0xff]
        %v250 = vld [vmem:[%s167 + $0x170] sm:$0xff]
        %v251 = vld [vmem:[%s167 + $0x178] sm:$0xff]
        %v252 = vld [vmem:[%s167 + $0x180] sm:$0xff]
        %v253 = vld [vmem:[%s167 + $0x188] sm:$0xff]
        %v254 = vld [vmem:[%s167 + $0x190] sm:$0xff]
        %v255 = vld [vmem:[%s167 + $0x198] sm:$0xff]
        %v256 = vld [vmem:[%s167 + $0x1a0] sm:$0xff]
        %v257 = vld [vmem:[%s167 + $0x1a8] sm:$0xff]
        %v258 = vld [vmem:[%s167 + $0x1b0] sm:$0xff]
        %v259 = vld [vmem:[%s167 + $0x1b8] sm:$0xff]
        %v260 = vld [vmem:[%s167 + $0x1c0] sm:$0xff]
        %v261 = vld [vmem:[%s167 + $0x1c8] sm:$0xff]
        %v262 = vld [vmem:[%s167 + $0x1d0] sm:$0xff]
        %v263 = vld [vmem:[%s167 + $0x1d8] sm:$0xff]
        %v264 = vld [vmem:[%s167 + $0x1e0] sm:$0xff]
        %v265 = vld [vmem:[%s167 + $0x1e8] sm:$0xff]
        %v266 = vld [vmem:[%s167 + $0x1f0] sm:$0xff]
        %v267 = vld [vmem:[%s167 + $0x1f8] sm:$0xff]
        %v268 = vld [vmem:[%s176] sm:$0xff]
        %v269 = vld [vmem:[%s176 + $0x8] sm:$0xff]
        %v270 = vld [vmem:[%s176 + $0x10] sm:$0xff]
        %v271 = vld [vmem:[%s176 + $0x18] sm:$0xff]
        %v272 = vld [vmem:[%s176 + $0x20] sm:$0xff]
        %v273 = vld [vmem:[%s176 + $0x28] sm:$0xff]
        %v274 = vld [vmem:[%s176 + $0x30] sm:$0xff]
        %v275 = vld [vmem:[%s176 + $0x38] sm:$0xff]
        %v276 = vld [vmem:[%s176 + $0x40] sm:$0xff]
        %v277 = vld [vmem:[%s176 + $0x48] sm:$0xff]
        %v278 = vld [vmem:[%s176 + $0x50] sm:$0xff]
        %v279 = vld [vmem:[%s176 + $0x58] sm:$0xff]
        %v280 = vld [vmem:[%s176 + $0x60] sm:$0xff]
        %v281 = vld [vmem:[%s176 + $0x68] sm:$0xff]
        %v282 = vld [vmem:[%s176 + $0x70] sm:$0xff]
        %v283 = vld [vmem:[%s176 + $0x78] sm:$0xff]
        %v284 = vld [vmem:[%s176 + $0x80] sm:$0xff]
        %v285 = vld [vmem:[%s176 + $0x88] sm:$0xff]
        %v286 = vld [vmem:[%s176 + $0x90] sm:$0xff]
        %v287 = vld [vmem:[%s176 + $0x98] sm:$0xff]
        %v288 = vld [vmem:[%s176 + $0xa0] sm:$0xff]
        %v289 = vld [vmem:[%s176 + $0xa8] sm:$0xff]
        %v290 = vld [vmem:[%s176 + $0xb0] sm:$0xff]
        %v291 = vld [vmem:[%s176 + $0xb8] sm:$0xff]
        %v292 = vld [vmem:[%s176 + $0xc0] sm:$0xff]
        %v293 = vld [vmem:[%s176 + $0xc8] sm:$0xff]
        %v294 = vld [vmem:[%s176 + $0xd0] sm:$0xff]
        %v295 = vld [vmem:[%s176 + $0xd8] sm:$0xff]
        %v296 = vld [vmem:[%s176 + $0xe0] sm:$0xff]
        %v297 = vld [vmem:[%s176 + $0xe8] sm:$0xff]
        %v298 = vld [vmem:[%s176 + $0xf0] sm:$0xff]
        %v299 = vld [vmem:[%s176 + $0xf8] sm:$0xff]
        %v300 = vld [vmem:[%s176 + $0x100] sm:$0xff]
        %v301 = vld [vmem:[%s176 + $0x108] sm:$0xff]
        %v302 = vld [vmem:[%s176 + $0x110] sm:$0xff]
        %v303 = vld [vmem:[%s176 + $0x118] sm:$0xff]
        %v304 = vld [vmem:[%s176 + $0x120] sm:$0xff]
        %v305 = vld [vmem:[%s176 + $0x128] sm:$0xff]
        %v306 = vld [vmem:[%s176 + $0x130] sm:$0xff]
        %v307 = vld [vmem:[%s176 + $0x138] sm:$0xff]
        %v308 = vld [vmem:[%s176 + $0x140] sm:$0xff]
        %v309 = vld [vmem:[%s176 + $0x148] sm:$0xff]
        %v310 = vld [vmem:[%s176 + $0x150] sm:$0xff]
        %v311 = vld [vmem:[%s176 + $0x158] sm:$0xff]
        %v312 = vld [vmem:[%s176 + $0x160] sm:$0xff]
        %v313 = vld [vmem:[%s176 + $0x168] sm:$0xff]
        %v314 = vld [vmem:[%s176 + $0x170] sm:$0xff]
        %v315 = vld [vmem:[%s176 + $0x178] sm:$0xff]
        %v316 = vld [vmem:[%s176 + $0x180] sm:$0xff]
        %v317 = vld [vmem:[%s176 + $0x188] sm:$0xff]
        %v318 = vld [vmem:[%s176 + $0x190] sm:$0xff]
        %v319 = vld [vmem:[%s176 + $0x198] sm:$0xff]
        %v320 = vld [vmem:[%s176 + $0x1a0] sm:$0xff]
        %v321 = vld [vmem:[%s176 + $0x1a8] sm:$0xff]
        %v322 = vld [vmem:[%s176 + $0x1b0] sm:$0xff]
        %v323 = vld [vmem:[%s176 + $0x1b8] sm:$0xff]
        %v324 = vld [vmem:[%s176 + $0x1c0] sm:$0xff]
        %v325 = vld [vmem:[%s176 + $0x1c8] sm:$0xff]
        %v326 = vld [vmem:[%s176 + $0x1d0] sm:$0xff]
        %v327 = vld [vmem:[%s176 + $0x1d8] sm:$0xff]
        %v328 = vld [vmem:[%s176 + $0x1e0] sm:$0xff]
        %v329 = vld [vmem:[%s176 + $0x1e8] sm:$0xff]
        %v330 = vld [vmem:[%s176 + $0x1f0] sm:$0xff]
        %v331 = vld [vmem:[%s176 + $0x1f8] sm:$0xff]
        %v332 = vadd.f32 %v204, %v205
        %v333 = vadd.f32 %v332, %v206
        %v334 = vadd.f32 %v333, %v207
        %v335 = vadd.f32 %v334, %v208
        %v336 = vadd.f32 %v335, %v209
        %v337 = vadd.f32 %v336, %v210
        %v338 = vadd.f32 %v337, %v211
        %v339 = vadd.f32 %v338, %v212
        %v340 = vadd.f32 %v339, %v213
        %v341 = vadd.f32 %v340, %v214
        %v342 = vadd.f32 %v341, %v215
        %v343 = vadd.f32 %v342, %v216
        %v344 = vadd.f32 %v343, %v217
        %v345 = vadd.f32 %v344, %v218
        %v346 = vadd.f32 %v345, %v219
        %v347 = vadd.f32 %v346, %v220
        %v348 = vadd.f32 %v347, %v221
        %v349 = vadd.f32 %v348, %v222
        %v350 = vadd.f32 %v349, %v223
        %v351 = vadd.f32 %v350, %v224
        %v352 = vadd.f32 %v351, %v225
        %v353 = vadd.f32 %v352, %v226
        %v354 = vadd.f32 %v353, %v227
        %v355 = vadd.f32 %v354, %v228
        %v356 = vadd.f32 %v355, %v229
        %v357 = vadd.f32 %v356, %v230
        %v358 = vadd.f32 %v357, %v231
        %v359 = vadd.f32 %v358, %v232
        %v360 = vadd.f32 %v359, %v233
        %v361 = vadd.f32 %v360, %v234
        %v362 = vadd.f32 %v361, %v235
        %v363 = vadd.f32 %v362, %v236
        %v364 = vadd.f32 %v363, %v237
        %v365 = vadd.f32 %v364, %v238
        %v366 = vadd.f32 %v365, %v239
        %v367 = vadd.f32 %v366, %v240
        %v368 = vadd.f32 %v367, %v241
        %v369 = vadd.f32 %v368, %v242
        %v370 = vadd.f32 %v369, %v243
        %v371 = vadd.f32 %v370, %v244
        %v372 = vadd.f32 %v371, %v245
        %v373 = vadd.f32 %v372, %v246
        %v374 = vadd.f32 %v373, %v247
        %v375 = vadd.f32 %v374, %v248
        %v376 = vadd.f32 %v375, %v249
        %v377 = vadd.f32 %v376, %v250
        %v378 = vadd.f32 %v377, %v251
        %v379 = vadd.f32 %v378, %v252
        %v380 = vadd.f32 %v379, %v253
        %v381 = vadd.f32 %v380, %v254
        %v382 = vadd.f32 %v381, %v255
        %v383 = vadd.f32 %v382, %v256
        %v384 = vadd.f32 %v383, %v257
        %v385 = vadd.f32 %v384, %v258
        %v386 = vadd.f32 %v385, %v259
        %v387 = vadd.f32 %v386, %v260
        %v388 = vadd.f32 %v387, %v261
        %v389 = vadd.f32 %v388, %v262
        %v390 = vadd.f32 %v389, %v263
        %v391 = vadd.f32 %v390, %v264
        %v392 = vadd.f32 %v391, %v265
        %v393 = vadd.f32 %v392, %v266
        %v394 = vadd.f32 %v393, %v267
        %395 = vst [vmem:[%s201] sm:$0xff] %v394
        %v396 = vadd.f32 %v268, %v269
        %v397 = vadd.f32 %v396, %v270
        %v398 = vadd.f32 %v397, %v271
        %v399 = vadd.f32 %v398, %v272
        %v400 = vadd.f32 %v399, %v273
        %v401 = vadd.f32 %v400, %v274
        %v402 = vadd.f32 %v401, %v275
        %v403 = vadd.f32 %v402, %v276
        %v404 = vadd.f32 %v403, %v277
        %v405 = vadd.f32 %v404, %v278
        %v406 = vadd.f32 %v405, %v279
        %v407 = vadd.f32 %v406, %v280
        %v408 = vadd.f32 %v407, %v281
        %v409 = vadd.f32 %v408, %v282
        %v410 = vadd.f32 %v409, %v283
        %v411 = vadd.f32 %v410, %v284
        %v412 = vadd.f32 %v411, %v285
        %v413 = vadd.f32 %v412, %v286
        %v414 = vadd.f32 %v413, %v287
        %v415 = vadd.f32 %v414, %v288
        %v416 = vadd.f32 %v415, %v289
        %v417 = vadd.f32 %v416, %v290
        %v418 = vadd.f32 %v417, %v291
        %v419 = vadd.f32 %v418, %v292
        %v420 = vadd.f32 %v419, %v293
        %v421 = vadd.f32 %v420, %v294
        %v422 = vadd.f32 %v421, %v295
        %v423 = vadd.f32 %v422, %v296
        %v424 = vadd.f32 %v423, %v297
        %v425 = vadd.f32 %v424, %v298
        %v426 = vadd.f32 %v425, %v299
        %v427 = vadd.f32 %v426, %v300
        %v428 = vadd.f32 %v427, %v301
        %v429 = vadd.f32 %v428, %v302
        %v430 = vadd.f32 %v429, %v303
        %v431 = vadd.f32 %v430, %v304
        %v432 = vadd.f32 %v431, %v305
        %v433 = vadd.f32 %v432, %v306
        %v434 = vadd.f32 %v433, %v307
        %v435 = vadd.f32 %v434, %v308
        %v436 = vadd.f32 %v435, %v309
        %v437 = vadd.f32 %v436, %v310
        %v438 = vadd.f32 %v437, %v311
        %v439 = vadd.f32 %v438, %v312
        %v440 = vadd.f32 %v439, %v313
        %v441 = vadd.f32 %v440, %v314
        %v442 = vadd.f32 %v441, %v315
        %v443 = vadd.f32 %v442, %v316
        %v444 = vadd.f32 %v443, %v317
        %v445 = vadd.f32 %v444, %v318
        %v446 = vadd.f32 %v445, %v319
        %v447 = vadd.f32 %v446, %v320
        %v448 = vadd.f32 %v447, %v321
        %v449 = vadd.f32 %v448, %v322
        %v450 = vadd.f32 %v449, %v323
        %v451 = vadd.f32 %v450, %v324
        %v452 = vadd.f32 %v451, %v325
        %v453 = vadd.f32 %v452, %v326
        %v454 = vadd.f32 %v453, %v327
        %v455 = vadd.f32 %v454, %v328
        %v456 = vadd.f32 %v455, %v329
        %v457 = vadd.f32 %v456, %v330
        %v458 = vadd.f32 %v457, %v331
        %s459 = scalar_lea.vmem %s201, 8 [#allocation7]
        %460 = vst [vmem:[%s459] sm:$0xff] %v458
        %s461 = sand.u32 %s82, 1
        %s462 = scalar_lea.sflag [#allocation4], %s461
        %s463 = sand.u32 %s82, 1
        %s464 = smul.addr %s463, 16
        %s465 = scalar_lea.vmem [#allocation7], %s464
        // Predicated region
        $region37: #{tpu_custom_call.1} parent=27 // pred_check
          %p466 = pneg %p92
        $region38: #{tpu_custom_call.1} parent=27 // pred_check_branch
          %468 = sbr.rel (%p466) target = $region40
        $region39: #{tpu_custom_call.1} parent=27 // pred_region
          %s470 = ssub.s32 256, 256
          %471 = vsyncadd %s462, %s470
          %s472 = smul.addr %s22, 2
          %s473 = smul.addr %s472, 128
          %s474 = scalar_lea.hbm %s2, %s473
          %s475 = sshll.u32 %s465, 4
          %s476 = int_to_ptr.vmem [resolvable:$true] %s475
          %481 = dma.vmem_to_hbm [thread:$0]  %s476, 256, %s474, %s462, 128, 128, 8
        $region40: #{tpu_custom_call.1} parent=27 // pred_fallthru
          _
      $region28: #{tpu_custom_call.1} parent=5 // pred_fallthru
        _
      %p482 = scmp.le.s32.totalorder 2, %s17
      // Predicated region
      $region41: #{tpu_custom_call.1} parent=5 // pred_check
        %p483 = pneg %p482
      $region42: #{tpu_custom_call.1} parent=5 // pred_check_branch
        %485 = sbr.rel (%p483) target = $region44
      $region43: #{tpu_custom_call.1} parent=5 // pred_region
        %s486 = ssub.s32 %s17, 2
        // Predicated region
        $region45: #{tpu_custom_call.1} parent=43 // pred_check
          %p487 = pneg %p98
        $region46: #{tpu_custom_call.1} parent=43 // pred_check_branch
          %489 = sbr.rel (%p487) target = $region48
        $region47: #{tpu_custom_call.1} parent=43 // pred_region
          %s490 = sand.u32 %s83, 1
          %s491 = scalar_lea.sflag [#allocation4], %s490
          %s492 = sand.u32 %s83, 1
          %s493 = smul.addr %s492, 16
          %s494 = scalar_lea.vmem [#allocation7], %s493
          %495 = dma.done %s491, 256
        $region48: #{tpu_custom_call.1} parent=43 // pred_fallthru
          _
      $region44: #{tpu_custom_call.1} parent=5 // pred_fallthru
        _
    $region6: #{tpu_custom_call.1} parent=1 // loop_footer
      %s21 = sadd.s32 1, %s17
    $region7: #{tpu_custom_call.1} parent=1 // loop_footer_branch
      %16 = sbr.rel target = $region3
    $region8: #{tpu_custom_call.1} parent=1 // loop_exit
      _
    %496 = vsyncpa [#allocation3], 1
    %s497 = scalar_lea.sflag [#allocation3], 1
    %498 = vsyncpa %s497, 1
    %499 = vsyncpa [#allocation6], 1
    %s500 = scalar_lea.sflag [#allocation6], 1
    %501 = vsyncpa %s500, 1
    %502 = vsyncpa [#allocation4], 1
    %s503 = scalar_lea.sflag [#allocation4], 1
    %504 = vsyncpa %s503, 1

</llo_original>
